<compile_context>
chip_gen: v7x
topology: tpu7x:2x2x1
jax: 0.10.0
libtpu: 0.0.40
codegen_flags: <defaults>
</compile_context>

<pallas_src>
import functools

import numpy as np
import jax
import jax.numpy as jnp
from jax.experimental import pallas as pl
from jax.experimental.pallas import tpu as pltpu


def get_sinusoid_encoding(position_size, hidden_size):
    """Same table as the PyTorch reference (numpy double precision, then f32)."""
    pos = np.arange(position_size, dtype=np.float64)[:, None]
    idx = np.arange(hidden_size, dtype=np.float64)[None, :]
    angle = pos / np.power(10000.0, 2.0 * (np.floor(idx / 2.0)) / hidden_size)
    table = np.array(angle)
    table[:, 0::2] = np.sin(table[:, 0::2])
    table[:, 1::2] = np.cos(table[:, 1::2])
    return jnp.asarray(table, dtype=jnp.float32)


def _embeddings_kernel(wid_ref, pid_ref,                        # SMEM scalar-prefetch ids
                       word_hbm, seg_ref, pos_ref, sid_ref,     # word table (HBM), resident tables, seg ids
                       gamma_ref, beta_ref,
                       out_ref,                                 # output tile (VMEM)
                       wbuf, pbuf, sem,                         # scratch
                       *, hidden_size, vocab_size, segment_size, position_size,
                       token_tile, eps):
    base = pl.program_id(0) * token_tile

    # 1) Issue data-dependent word-row gathers (HBM -> VMEM), one DMA per row, all on a
    #    single semaphore.  Issued first so their latency overlaps steps 2-3 below.
    @pl.loop(0, token_tile)
    def _issue(t):
        wid = jnp.clip(wid_ref[base + t], 0, vocab_size - 1)
        pltpu.make_async_copy(word_hbm.at[pl.ds(wid, 1), :],
                              wbuf.at[pl.ds(t, 1), :], sem).start()

    # 2) Position embeddings: dynamic row reads from the VMEM-resident sinusoid table
    #    (pure vld/vst, no DMA descriptors).
    @pl.loop(0, token_tile)
    def _pos(t):
        p = jnp.clip(pid_ref[base + t], 0, position_size - 1)
        pbuf[pl.ds(t, 1), :] = pos_ref[pl.ds(p, 1), :]

    # 3) Segment embeddings: G-way vectorized select against the resident (G, H) table.
    sid = sid_ref[...]                                            # (tile, 1) int32
    seg = jnp.zeros((token_tile, hidden_size), jnp.float32)
    for g in range(segment_size):                                 # static; G is tiny
        row = seg_ref[pl.ds(g, 1), :]                             # (1, H)
        mask = jnp.broadcast_to(sid == g, (token_tile, hidden_size))
        rowb = jnp.broadcast_to(row, (token_tile, hidden_size))
        seg = jnp.where(mask, rowb, seg)

    # 4) One batched wait for all token_tile word-row copies: DMA semaphores count bytes,
    #    so a (tile, H)-sized wait covers every (1, H) copy issued on `sem` above.
    pltpu.make_async_copy(wbuf, wbuf, sem).wait()

    # 5) Combine + LayerNorm (f32, VPU/XLU only; no MXU).
    e = (hidden_size ** 0.5) * wbuf[...] + seg + pbuf[...]
    mean = jnp.mean(e, axis=-1, keepdims=True)
    cent = e - mean
    var = jnp.mean(cent * cent, axis=-1, keepdims=True)
    y = cent * jax.lax.rsqrt(var + eps) * gamma_ref[...] + beta_ref[...]

    # TODO(synk): dropout treated as eval-mode identity (PyTorch training RNG not reproducible).
    out_ref[...] = y.astype(out_ref.dtype)


def transformer_embeddings(input_ids, segment_ids, position_ids,
                           word_table, seg_table, pos_table, gamma, beta,
                           *, token_tile=512):
    B, S = input_ids.shape
    V, H = word_table.shape
    G = seg_table.shape[0]
    P = pos_table.shape[0]
    T = B * S

    # Default position ids path of the reference forward: cumsum(ones) - 1, clamped.
    if position_ids is None:
        position_ids = jnp.clip(
            jnp.broadcast_to(jnp.arange(S, dtype=jnp.int32), (B, S)), 0, P - 1)

    # Token tile: 8-aligned, clamped to the padded token count, kept small enough to give
    # >=2 grid steps (v7x megacore) and to stay well under a 48 MiB VMEM budget.
    tile = min(token_tile, ((T + 7) // 8) * 8)
    tile = max(8, (tile // 8) * 8)
    if T > 8 and (T + tile - 1) // tile < 2:
        tile = max(8, ((((T + 1) // 2) + 7) // 8) * 8)

    def footprint(t):
        # output double-buffer (2x) + word/pos scratch + resident pos/seg tables
        # (pessimistic 2x) + segment-id blocks + gamma/beta.
        return (4 * t * H * 4 + 2 * (P + G) * H * 4 + 4 * t * 4 + 4 * H * 4)

    while tile > 8 and footprint(tile) > (40 << 20):
        tile = max(8, ((tile // 2) // 8) * 8)

    T_pad = ((T + tile - 1) // tile) * tile

    def flat_pad(x):
        f = x.reshape(T).astype(jnp.int32)
        return jnp.pad(f, (0, T_pad - T))

    wid = flat_pad(input_ids)
    pid = flat_pad(position_ids)
    sid2d = flat_pad(segment_ids).reshape(T_pad, 1)

    gamma2 = gamma.reshape(1, H).astype(jnp.float32)
    beta2 = beta.reshape(1, H).astype(jnp.float32)
    word_table = word_table.astype(jnp.float32)
    seg_table = seg_table.astype(jnp.float32)
    pos_table = pos_table.astype(jnp.float32)

    kernel = functools.partial(
        _embeddings_kernel, hidden_size=H, vocab_size=V, segment_size=G,
        position_size=P, token_tile=tile, eps=1e-5)

    # Real footprint + 25% headroom, capped at 48 MiB so it is always v7x (64 MiB) safe.
    vmem_limit = int(min(48 << 20, max(16 << 20, int(footprint(tile) * 1.25))))

    out = pl.pallas_call(
        kernel,
        out_shape=jax.ShapeDtypeStruct((T_pad, H), jnp.float32),
        grid_spec=pltpu.PrefetchScalarGridSpec(
            num_scalar_prefetch=2,                      # word ids / position ids -> SMEM
            grid=(T_pad // tile,),
            in_specs=[
                pl.BlockSpec(memory_space=pl.ANY),             # word table stays in HBM
                pl.BlockSpec((G, H), lambda i, *_: (0, 0)),    # segment table, VMEM-resident
                pl.BlockSpec((P, H), lambda i, *_: (0, 0)),    # sinusoid table, VMEM-resident
                pl.BlockSpec((tile, 1), lambda i, *_: (i, 0)), # segment ids column
                pl.BlockSpec((1, H), lambda i, *_: (0, 0)),    # layernorm gamma
                pl.BlockSpec((1, H), lambda i, *_: (0, 0)),    # layernorm beta
            ],
            out_specs=pl.BlockSpec((tile, H), lambda i, *_: (i, 0)),
            scratch_shapes=[
                pltpu.VMEM((tile, H), jnp.float32),      # gathered word rows
                pltpu.VMEM((tile, H), jnp.float32),      # gathered position rows
                pltpu.SemaphoreType.DMA,                 # single DMA sem for the word gather
            ],
        ),
        compiler_params=pltpu.CompilerParams(
            dimension_semantics=("parallel",),
            vmem_limit_bytes=vmem_limit,
        ),
    )(wid, pid, word_table, seg_table, pos_table, sid2d, gamma2, beta2)

    return out[:T].reshape(B, S, H)


if __name__ == "__main__":
    # Small shapes consistent with the module's forward; H is a multiple of 128 so output
    # stores are lane-dense, and T = 256 gives a 2-step grid (tile auto-clamped to 128).
    vocab_size, hidden_size = 64, 128
    position_size, segment_size = 64, 2
    B, S = 4, 64

    key = jax.random.PRNGKey(0)
    k_word, k_seg, k_ids, k_segids = jax.random.split(key, 4)

    # WordEmbedding: normal(0, hidden_size^-0.5), padding_idx=0 row zeroed.
    word_table = (jax.random.normal(k_word, (vocab_size, hidden_size), jnp.float32)
                  * (hidden_size ** -0.5))
    word_table = word_table.at[0].set(0.0)
    # SegmentEmbedding: nn.Embedding default init N(0, 1).
    seg_table = jax.random.normal(k_seg, (segment_size, hidden_size), jnp.float32)
    # PositionalEmbedding: fixed sinusoid buffer.
    pos_table = get_sinusoid_encoding(position_size, hidden_size)
    # LayerNorm defaults: weight=1, bias=0.
    gamma = jnp.ones((hidden_size,), jnp.float32)
    beta = jnp.zeros((hidden_size,), jnp.float32)

    input_ids = jax.random.randint(k_ids, (B, S), 0, vocab_size, dtype=jnp.int32)
    segment_ids = jax.random.randint(k_segids, (B, S), 0, segment_size, dtype=jnp.int32)

    out = transformer_embeddings(input_ids, segment_ids, None,
                                 word_table, seg_table, pos_table, gamma, beta)
    jax.block_until_ready(out)

    # Pure-JAX reference check (same math, eval-mode dropout).
    pos_ids = jnp.clip(jnp.broadcast_to(jnp.arange(S, dtype=jnp.int32), (B, S)),
                       0, position_size - 1)
    e = ((hidden_size ** 0.5) * word_table[input_ids]
         + seg_table[segment_ids] + pos_table[pos_ids])
    mean = jnp.mean(e, -1, keepdims=True)
    var = jnp.mean((e - mean) ** 2, -1, keepdims=True)
    ref = (e - mean) * jax.lax.rsqrt(var + 1e-5) * gamma + beta

    assert out.shape == (B, S, hidden_size) and out.dtype == jnp.float32
    assert float(jnp.max(jnp.abs(out - ref))) < 1e-3
    print("KERNEL_OK")
</pallas_src>

<mosaic_0001>
module attributes {stable_mosaic.version = 11 : i64} {
  func.func @_embeddings_kernel(%arg0: i32, %arg1: memref<256xi32, #tpu.memory_space<smem>>, %arg2: memref<256xi32, #tpu.memory_space<smem>>, %arg3: memref<64x128xf32, #tpu.memory_space<any>>, %arg4: memref<2x128xf32, #tpu.memory_space<vmem>>, %arg5: memref<64x128xf32, #tpu.memory_space<vmem>>, %arg6: memref<128x1xi32, #tpu.memory_space<vmem>>, %arg7: memref<1x128xf32, #tpu.memory_space<vmem>>, %arg8: memref<1x128xf32, #tpu.memory_space<vmem>>, %arg9: memref<128x128xf32, #tpu.memory_space<vmem>>, %arg10: memref<128x128xf32, #tpu.memory_space<vmem>>, %arg11: memref<128x128xf32, #tpu.memory_space<vmem>>, %arg12: memref<!tpu.dma_semaphore, #tpu.memory_space<semaphore_mem>>) attributes {dimension_semantics = [#tpu.dimension_semantics<parallel>], iteration_bounds = array<i64: 2>, scalar_prefetch = 2 : i64, scratch_operands = 3 : i64, tpu.core_type = #tpu.core_type<tc>, window_params = [{}, {pipeline_mode = #tpu.pipeline_mode<synchronous>, transform_indices = @transform_1, window_bounds = array<i64: 2, 128>}, {pipeline_mode = #tpu.pipeline_mode<synchronous>, transform_indices = @transform_2, window_bounds = array<i64: 64, 128>}, {transform_indices = @transform_3, window_bounds = array<i64: 128, 1>}, {pipeline_mode = #tpu.pipeline_mode<synchronous>, transform_indices = @transform_4, window_bounds = array<i64: 1, 128>}, {pipeline_mode = #tpu.pipeline_mode<synchronous>, transform_indices = @transform_5, window_bounds = array<i64: 1, 128>}, {transform_indices = @transform_6, window_bounds = array<i64: 128, 128>}]} {
    %c128_i32 = arith.constant 128 : i32
    %0 = arith.muli %arg0, %c128_i32 : i32
    %c0_i32 = arith.constant 0 : i32
    %c128_i32_0 = arith.constant 128 : i32
    %1 = arith.addi %c0_i32, %c128_i32_0 : i32
    %c1_i32 = arith.constant 1 : i32
    scf.for %arg13 = %c0_i32 to %1 step %c1_i32  : i32 {
      %c1_i32_28 = arith.constant 1 : i32
      %50 = arith.muli %arg13, %c1_i32_28 : i32
      %c0_i32_29 = arith.constant 0 : i32
      %51 = arith.addi %c0_i32_29, %50 : i32
      %52 = arith.addi %0, %51 : i32
      %53 = arith.index_cast %52 : i32 to index
      %54 = memref.load %arg1[%53] : memref<256xi32, #tpu.memory_space<smem>>
      %c0_i32_30 = arith.constant 0 : i32
      %c63_i32 = arith.constant 63 : i32
      %55 = arith.maxsi %c0_i32_30, %54 : i32
      %56 = arith.minsi %c63_i32, %55 : i32
      %c0_i32_31 = arith.constant 0 : i32
      %57 = tpu.memref_slice %arg3[%56, %c0_i32_31] : memref<64x128xf32, #tpu.memory_space<any>> -> memref<1x128xf32, #tpu.memory_space<any>>
      %c0_i32_32 = arith.constant 0 : i32
      %58 = tpu.memref_slice %arg10[%51, %c0_i32_32] : memref<128x128xf32, #tpu.memory_space<vmem>> -> memref<1x128xf32, #tpu.memory_space<vmem>>
      tpu.enqueue_dma source(%57 : memref<1x128xf32, #tpu.memory_space<any>>) target(%58 : memref<1x128xf32, #tpu.memory_space<vmem>>) target_semaphore(%arg12 : memref<!tpu.dma_semaphore, #tpu.memory_space<semaphore_mem>>)
    }
    %c128_i32_1 = arith.constant 128 : i32
    %c0_i32_2 = arith.constant 0 : i32
    %c128_i32_3 = arith.constant 128 : i32
    %2 = arith.addi %c0_i32_2, %c128_i32_3 : i32
    %c1_i32_4 = arith.constant 1 : i32
    scf.for %arg13 = %c0_i32_2 to %2 step %c1_i32_4  : i32 {
      %c1_i32_28 = arith.constant 1 : i32
      %50 = arith.muli %arg13, %c1_i32_28 : i32
      %c0_i32_29 = arith.constant 0 : i32
      %51 = arith.addi %c0_i32_29, %50 : i32
      %52 = arith.addi %0, %51 : i32
      %53 = arith.index_cast %52 : i32 to index
      %54 = memref.load %arg2[%53] : memref<256xi32, #tpu.memory_space<smem>>
      %c0_i32_30 = arith.constant 0 : i32
      %c63_i32 = arith.constant 63 : i32
      %55 = arith.maxsi %c0_i32_30, %54 : i32
      %56 = arith.minsi %c63_i32, %55 : i32
      %57 = arith.index_cast %56 : i32 to index
      %c0_31 = arith.constant 0 : index
      %58 = vector.load %arg5[%57, %c0_31] : memref<64x128xf32, #tpu.memory_space<vmem>>, vector<1x128xf32>
      %59 = arith.index_cast %51 : i32 to index
      %c0_32 = arith.constant 0 : index
      %60 = vector.load %arg11[%59, %c0_32] : memref<128x128xf32, #tpu.memory_space<vmem>>, vector<1x128xf32>
      tpu.vector_store %arg11[%59, %c0_32], %58 {strides = array<i32>} : memref<128x128xf32, #tpu.memory_space<vmem>>, vector<1x128xf32>,
    }
    %c128_i32_5 = arith.constant 128 : i32
    %c0 = arith.constant 0 : index
    %c0_6 = arith.constant 0 : index
    %3 = vector.load %arg6[%c0, %c0_6] : memref<128x1xi32, #tpu.memory_space<vmem>>, vector<128x1xi32>
    %cst = arith.constant 0.000000e+00 : f32
    %4 = vector.broadcast %cst : f32 to vector<128x128xf32>
    %c0_7 = arith.constant 0 : index
    %c0_8 = arith.constant 0 : index
    %5 = vector.load %arg4[%c0_7, %c0_8] : memref<2x128xf32, #tpu.memory_space<vmem>>, vector<1x128xf32>
    %c0_i32_9 = arith.constant 0 : i32
    %6 = vector.broadcast %c0_i32_9 : i32 to vector<128x1xi32>
    %7 = arith.cmpi eq, %3, %6 : vector<128x1xi32>
    %8 = vector.shape_cast %7 : vector<128x1xi1> to vector<128x1xi1>
    %9 = vector.broadcast %8 : vector<128x1xi1> to vector<128x128xi1>
    %10 = vector.shape_cast %5 : vector<1x128xf32> to vector<1x128xf32>
    %11 = vector.broadcast %10 : vector<1x128xf32> to vector<128x128xf32>
    %12 = arith.select %9, %11, %4 : vector<128x128xi1>, vector<128x128xf32>
    %c1 = arith.constant 1 : index
    %c0_10 = arith.constant 0 : index
    %13 = vector.load %arg4[%c1, %c0_10] : memref<2x128xf32, #tpu.memory_space<vmem>>, vector<1x128xf32>
    %c1_i32_11 = arith.constant 1 : i32
    %14 = vector.broadcast %c1_i32_11 : i32 to vector<128x1xi32>
    %15 = arith.cmpi eq, %3, %14 : vector<128x1xi32>
    %16 = vector.shape_cast %15 : vector<128x1xi1> to vector<128x1xi1>
    %17 = vector.broadcast %16 : vector<128x1xi1> to vector<128x128xi1>
    %18 = vector.shape_cast %13 : vector<1x128xf32> to vector<1x128xf32>
    %19 = vector.broadcast %18 : vector<1x128xf32> to vector<128x128xf32>
    %20 = arith.select %17, %19, %12 : vector<128x128xi1>, vector<128x128xf32>
    tpu.wait_dma2 semaphore(%arg12 : memref<!tpu.dma_semaphore, #tpu.memory_space<semaphore_mem>>) src(%arg10 : memref<128x128xf32, #tpu.memory_space<vmem>>) dst(%arg10 : memref<128x128xf32, #tpu.memory_space<vmem>>)
    %c0_12 = arith.constant 0 : index
    %c0_13 = arith.constant 0 : index
    %21 = vector.load %arg10[%c0_12, %c0_13] : memref<128x128xf32, #tpu.memory_space<vmem>>, vector<128x128xf32>
    %cst_14 = arith.constant 11.3137083 : f32
    %22 = vector.broadcast %cst_14 : f32 to vector<128x128xf32>
    %23 = arith.mulf %22, %21 : vector<128x128xf32>
    %24 = arith.addf %23, %20 : vector<128x128xf32>
    %c0_15 = arith.constant 0 : index
    %c0_16 = arith.constant 0 : index
    %25 = vector.load %arg11[%c0_15, %c0_16] : memref<128x128xf32, #tpu.memory_space<vmem>>, vector<128x128xf32>
    %26 = arith.addf %24, %25 : vector<128x128xf32>
    %cst_17 = arith.constant dense<0.000000e+00> : vector<128xf32>
    %27 = vector.multi_reduction <add>, %26, %cst_17 [1] : vector<128x128xf32> to vector<128xf32>
    %28 = vector.shape_cast %27 : vector<128xf32> to vector<128x1xf32>
    %cst_18 = arith.constant 1.280000e+02 : f32
    %29 = vector.broadcast %cst_18 : f32 to vector<128x1xf32>
    %30 = arith.divf %28, %29 : vector<128x1xf32>
    %31 = vector.broadcast %30 : vector<128x1xf32> to vector<128x128xf32>
    %32 = arith.subf %26, %31 : vector<128x128xf32>
    %33 = arith.mulf %32, %32 : vector<128x128xf32>
    %cst_19 = arith.constant dense<0.000000e+00> : vector<128xf32>
    %34 = vector.multi_reduction <add>, %33, %cst_19 [1] : vector<128x128xf32> to vector<128xf32>
    %35 = vector.shape_cast %34 : vector<128xf32> to vector<128x1xf32>
    %cst_20 = arith.constant 1.280000e+02 : f32
    %36 = vector.broadcast %cst_20 : f32 to vector<128x1xf32>
    %37 = arith.divf %35, %36 : vector<128x1xf32>
    %cst_21 = arith.constant 9.99999974E-6 : f32
    %38 = vector.broadcast %cst_21 : f32 to vector<128x1xf32>
    %39 = arith.addf %37, %38 : vector<128x1xf32>
    %40 = math.rsqrt %39 : vector<128x1xf32>
    %41 = vector.broadcast %40 : vector<128x1xf32> to vector<128x128xf32>
    %42 = arith.mulf %32, %41 : vector<128x128xf32>
    %c0_22 = arith.constant 0 : index
    %c0_23 = arith.constant 0 : index
    %43 = vector.load %arg7[%c0_22, %c0_23] : memref<1x128xf32, #tpu.memory_space<vmem>>, vector<1x128xf32>
    %44 = vector.broadcast %43 : vector<1x128xf32> to vector<128x128xf32>
    %45 = arith.mulf %42, %44 : vector<128x128xf32>
    %c0_24 = arith.constant 0 : index
    %c0_25 = arith.constant 0 : index
    %46 = vector.load %arg8[%c0_24, %c0_25] : memref<1x128xf32, #tpu.memory_space<vmem>>, vector<1x128xf32>
    %47 = vector.broadcast %46 : vector<1x128xf32> to vector<128x128xf32>
    %48 = arith.addf %45, %47 : vector<128x128xf32>
    %c0_26 = arith.constant 0 : index
    %c0_27 = arith.constant 0 : index
    %49 = vector.load %arg9[%c0_26, %c0_27] : memref<128x128xf32, #tpu.memory_space<vmem>>, vector<128x128xf32>
    tpu.vector_store %arg9[%c0_26, %c0_27], %48 {strides = array<i32>} : memref<128x128xf32, #tpu.memory_space<vmem>>, vector<128x128xf32>,
    return
  }
  func.func @transform_1(%arg0: i32, %arg1: memref<256xi32, #tpu.memory_space<smem>>, %arg2: memref<256xi32, #tpu.memory_space<smem>>) -> (i32, i32) {
    %c0_i32 = arith.constant 0 : i32
    %c0_i32_0 = arith.constant 0 : i32
    %c0_i32_1 = arith.constant 0 : i32
    return %c0_i32, %c0_i32_0 : i32, i32
  }
  func.func @transform_2(%arg0: i32, %arg1: memref<256xi32, #tpu.memory_space<smem>>, %arg2: memref<256xi32, #tpu.memory_space<smem>>) -> (i32, i32) {
    %c0_i32 = arith.constant 0 : i32
    %c0_i32_0 = arith.constant 0 : i32
    %c0_i32_1 = arith.constant 0 : i32
    return %c0_i32, %c0_i32_0 : i32, i32
  }
  func.func @transform_3(%arg0: i32, %arg1: memref<256xi32, #tpu.memory_space<smem>>, %arg2: memref<256xi32, #tpu.memory_space<smem>>) -> (i32, i32) {
    %c0_i32 = arith.constant 0 : i32
    %c0_i32_0 = arith.constant 0 : i32
    return %arg0, %c0_i32 : i32, i32
  }
  func.func @transform_4(%arg0: i32, %arg1: memref<256xi32, #tpu.memory_space<smem>>, %arg2: memref<256xi32, #tpu.memory_space<smem>>) -> (i32, i32) {
    %c0_i32 = arith.constant 0 : i32
    %c0_i32_0 = arith.constant 0 : i32
    %c0_i32_1 = arith.constant 0 : i32
    return %c0_i32, %c0_i32_0 : i32, i32
  }
  func.func @transform_5(%arg0: i32, %arg1: memref<256xi32, #tpu.memory_space<smem>>, %arg2: memref<256xi32, #tpu.memory_space<smem>>) -> (i32, i32) {
    %c0_i32 = arith.constant 0 : i32
    %c0_i32_0 = arith.constant 0 : i32
    %c0_i32_1 = arith.constant 0 : i32
    return %c0_i32, %c0_i32_0 : i32, i32
  }
  func.func @transform_6(%arg0: i32, %arg1: memref<256xi32, #tpu.memory_space<smem>>, %arg2: memref<256xi32, #tpu.memory_space<smem>>) -> (i32, i32) {
    %c0_i32 = arith.constant 0 : i32
    %c0_i32_0 = arith.constant 0 : i32
    return %arg0, %c0_i32 : i32, i32
  }
}

</mosaic_0001>

<llo_original>
// kernel: tpu_custom_call.1
$region0: #{tpu_custom_call.1}
  #allocation0 [shape = 'u32[]', space=smem, size = 0x4, offset = 0x4, fixed_abs, tag = 'smem constant byte address 0x4 - core index']
  #allocation1 [shape = 'u32[144,128]{1,0:T(1,128)}', space=vmem, size = 0x12000, scoped, tag = 'internal scratch']
  #allocation2 [shape = 'f32[128,128]{1,0:T(8,128)}', space=vmem, size = 0x10000, scoped, tag = 'scratch operand']
  #allocation3 [shape = 'f32[128,128]{1,0:T(8,128)}', space=vmem, size = 0x10000, scoped, tag = 'scratch operand']
  #allocation4 [shape = 's32[1]{0}', space=sflag, size = 0x4, scoped, tag = 'scratch operand']
  #allocation5 [shape = 's32[1]{0}', space=sflag, size = 0x4, scoped, tag = 'scoped memory for tpu_custom_call.1']
  #allocation6 [shape = 'u8[1024]{0}', space=smem, size = 0x400, scoped, tag = 'prefetched SMEM operand 0']
  #allocation7 [shape = 'u8[1024]{0}', space=smem, size = 0x400, scoped, tag = 'prefetched SMEM operand 1']
  #allocation10 [shape = 's32[]', space=sflag, size = 0x4, offset = 0, fixed_abs, tag = 'sflag constant byte address 0x0 - dummy sync flag']
  %s0 = inlined_call_operand.vmem [shape: s32[256], index: 0, kind: input, shape index: {}]
  %s1 = inlined_call_operand.vmem [shape: s32[256], index: 1, kind: input, shape index: {}]
  %s2 = inlined_call_operand.vmem [shape: f32[64,128], index: 2, kind: input, shape index: {}]
  %s3 = inlined_call_operand.vmem [shape: f32[2,128], index: 3, kind: input, shape index: {}]
  %s4 = inlined_call_operand.vmem [shape: f32[64,128], index: 4, kind: input, shape index: {}]
  %s5 = inlined_call_operand.vmem [shape: s32[256,1], index: 5, kind: input, shape index: {}]
  %s6 = inlined_call_operand.vmem [shape: f32[1,128], index: 6, kind: input, shape index: {}]
  %s7 = inlined_call_operand.vmem [shape: f32[1,128], index: 7, kind: input, shape index: {}]
  %s8 = inlined_call_operand.hbm [shape: f32[256,128], index: 8, kind: output, shape index: {}]
  %s9 = sld [smem:[#allocation0]]
  $region97: #{tpu_custom_call.1} parent=0
    _
  %s11 = ssub.s32 1, %s9
  %s12 = scalar_select 0, %s11, %s9
  %s13 = sshll.u32 %s0, 4
  %s14 = int_to_ptr.vmem [resolvable:$true] %s13
  %16 = dma.vmem_to_smem %s14, 32, [#allocation6], [#allocation5]
  %s17 = sshll.u32 %s1, 4
  %s18 = int_to_ptr.vmem [resolvable:$true] %s17
  %20 = dma.vmem_to_smem %s18, 32, [#allocation7], [#allocation5]
  %21 = dma.done [#allocation5], 64
  %22 = sfence
  $region1: #{tpu_custom_call.1} parent=0
    #allocation8 [shape = 'u8[131072]{0}', space=vmem, size = 0x20000, scoped, tag = 'output window, operand 0']
    #allocation9 [shape = 's32[2]{0}', space=sflag, size = 0x8, scoped, tag = 'scoped memory for tpu_custom_call.1']
    %23 = vsyncpa [#allocation9], 0
    %s24 = scalar_lea.sflag [#allocation9], 1
    %25 = vsyncpa %s24, 0
    loop: start=0, step=1, limit=4
    $region2: #{tpu_custom_call.1} parent=1 // loop_pre_header
      _
    $region3: #{tpu_custom_call.1} parent=1 // loop_header
      %s27 = sphi 0, %s31
      %p28 = scmp.ge.s32.totalorder %s27, 4
      %s35 = sphi 0, %s35
      %s37 = sphi 0, %s35
      %s38 = sphi 0, %s37
      %s52 = sphi 0, %s38
      %s56 = sphi 0, %s56
      %s58 = sphi 0, %s56
      %s59 = sphi 0, %s58
      %s73 = sphi 0, %s59
      %s79 = sphi 0, %s81
      %s82 = sphi 0, %s79
      %s83 = sphi 0, %s82
      %s99 = sphi 0, %s83
      %s103 = sphi 0, %s103
      %s105 = sphi 0, %s103
      %s106 = sphi 0, %s105
      %s120 = sphi 0, %s106
      %s124 = sphi 0, %s124
      %s126 = sphi 0, %s124
      %s127 = sphi 0, %s126
      %s141 = sphi 0, %s127
      %s147 = sphi 0, %s149
      %s150 = sphi 0, %s147
      %s151 = sphi 0, %s150
      %s167 = sphi 0, %s151
    $region4: #{tpu_custom_call.1} parent=1 // loop_header_branch
      %30 = sbr.rel (%p28) target = $region8
    $region5: #{tpu_custom_call.1} parent=1 // loop_body
      %s32 = ssub.s32 %s27, 1
      %s33 = ssub.s32 %s27, 2
      %s34 = sadd.s32 %s27, 1
      %s36 = sadd.s32 %s35, 1
      %p39 = scmp.eq.s32.totalorder %s27, 1
      %p40 = scmp.ne.s32.totalorder %s35, %s37
      %p41 = scmp.eq.s32.totalorder %s27, 0
      %p42 = por %p40, %p41
      %p43 = scmp.ne.s32.totalorder %s35, %s37
      %p44 = scmp.eq.s32.totalorder %s32, 1
      %p45 = por %p43, %p44
      %p46 = scmp.ne.s32.totalorder %s37, %s38
      %p47 = scmp.eq.s32.totalorder %s32, 0
      %p48 = por %p46, %p47
      %p49 = scmp.ne.s32.totalorder %s37, %s38
      %p50 = scmp.eq.s32.totalorder %s33, 1
      %p51 = por %p49, %p50
      %p53 = scmp.ne.s32.totalorder %s38, %s52
      %p54 = scmp.eq.s32.totalorder %s33, 0
      %p55 = por %p53, %p54
      %s57 = sadd.s32 %s56, 1
      %p60 = scmp.eq.s32.totalorder %s27, 1
      %p61 = scmp.ne.s32.totalorder %s56, %s58
      %p62 = scmp.eq.s32.totalorder %s27, 0
      %p63 = por %p61, %p62
      %p64 = scmp.ne.s32.totalorder %s56, %s58
      %p65 = scmp.eq.s32.totalorder %s32, 1
      %p66 = por %p64, %p65
      %p67 = scmp.ne.s32.totalorder %s58, %s59
      %p68 = scmp.eq.s32.totalorder %s32, 0
      %p69 = por %p67, %p68
      %p70 = scmp.ne.s32.totalorder %s58, %s59
      %p71 = scmp.eq.s32.totalorder %s33, 1
      %p72 = por %p70, %p71
      %p74 = scmp.ne.s32.totalorder %s59, %s73
      %p75 = scmp.eq.s32.totalorder %s33, 0
      %p76 = por %p74, %p75
      %s77 = ssub.s32 %s27, %s34
      %p78 = scmp.eq.s32.totalorder %s77, 0
      %s80 = sadd.s32 %s79, 1
      %s81 = scalar_select %p78, %s79, %s80
      %p84 = pneg %p78
      %p85 = scmp.eq.s32.totalorder %s27, 1
      %p86 = por %p84, %p85
      %p87 = scmp.ne.s32.totalorder %s79, %s82
      %p88 = scmp.eq.s32.totalorder %s27, 0
      %p89 = por %p87, %p88
      %p90 = scmp.ne.s32.totalorder %s79, %s82
      %p91 = scmp.eq.s32.totalorder %s32, 1
      %p92 = por %p90, %p91
      %p93 = scmp.ne.s32.totalorder %s82, %s83
      %p94 = scmp.eq.s32.totalorder %s32, 0
      %p95 = por %p93, %p94
      %p96 = scmp.ne.s32.totalorder %s82, %s83
      %p97 = scmp.eq.s32.totalorder %s33, 1
      %p98 = por %p96, %p97
      %p100 = scmp.ne.s32.totalorder %s83, %s99
      %p101 = scmp.eq.s32.totalorder %s33, 0
      %p102 = por %p100, %p101
      %s104 = sadd.s32 %s103, 1
      %p107 = scmp.eq.s32.totalorder %s27, 1
      %p108 = scmp.ne.s32.totalorder %s103, %s105
      %p109 = scmp.eq.s32.totalorder %s27, 0
      %p110 = por %p108, %p109
      %p111 = scmp.ne.s32.totalorder %s103, %s105
      %p112 = scmp.eq.s32.totalorder %s32, 1
      %p113 = por %p111, %p112
      %p114 = scmp.ne.s32.totalorder %s105, %s106
      %p115 = scmp.eq.s32.totalorder %s32, 0
      %p116 = por %p114, %p115
      %p117 = scmp.ne.s32.totalorder %s105, %s106
      %p118 = scmp.eq.s32.totalorder %s33, 1
      %p119 = por %p117, %p118
      %p121 = scmp.ne.s32.totalorder %s106, %s120
      %p122 = scmp.eq.s32.totalorder %s33, 0
      %p123 = por %p121, %p122
      %s125 = sadd.s32 %s124, 1
      %p128 = scmp.eq.s32.totalorder %s27, 1
      %p129 = scmp.ne.s32.totalorder %s124, %s126
      %p130 = scmp.eq.s32.totalorder %s27, 0
      %p131 = por %p129, %p130
      %p132 = scmp.ne.s32.totalorder %s124, %s126
      %p133 = scmp.eq.s32.totalorder %s32, 1
      %p134 = por %p132, %p133
      %p135 = scmp.ne.s32.totalorder %s126, %s127
      %p136 = scmp.eq.s32.totalorder %s32, 0
      %p137 = por %p135, %p136
      %p138 = scmp.ne.s32.totalorder %s126, %s127
      %p139 = scmp.eq.s32.totalorder %s33, 1
      %p140 = por %p138, %p139
      %p142 = scmp.ne.s32.totalorder %s127, %s141
      %p143 = scmp.eq.s32.totalorder %s33, 0
      %p144 = por %p142, %p143
      %s145 = ssub.s32 %s27, %s34
      %p146 = scmp.eq.s32.totalorder %s145, 0
      %s148 = sadd.s32 %s147, 1
      %s149 = scalar_select %p146, %s147, %s148
      %p152 = pneg %p146
      %p153 = scmp.eq.s32.totalorder %s27, 1
      %p154 = por %p152, %p153
      %p155 = scmp.ne.s32.totalorder %s147, %s150
      %p156 = scmp.eq.s32.totalorder %s27, 0
      %p157 = por %p155, %p156
      %p158 = scmp.ne.s32.totalorder %s147, %s150
      %p159 = scmp.eq.s32.totalorder %s32, 1
      %p160 = por %p158, %p159
      %p161 = scmp.ne.s32.totalorder %s150, %s151
      %p162 = scmp.eq.s32.totalorder %s32, 0
      %p163 = por %p161, %p162
      %p164 = scmp.ne.s32.totalorder %s150, %s151
      %p165 = scmp.eq.s32.totalorder %s33, 1
      %p166 = por %p164, %p165
      %p168 = scmp.ne.s32.totalorder %s151, %s167
      %p169 = scmp.eq.s32.totalorder %s33, 0
      %p170 = por %p168, %p169
      %p171 = scmp.le.s32.totalorder 1, %s27
      %p172 = scmp.lt.s32.totalorder %s27, 3
      %p173 = pnand %p171, %p172
      %p174 = pneg %p173
      // Predicated region
      $region9: #{tpu_custom_call.1} parent=5 // pred_check
        _
      $region10: #{tpu_custom_call.1} parent=5 // pred_check_branch
        %176 = sbr.rel (%p173) target = $region12
      $region11: #{tpu_custom_call.1} parent=5 // pred_region
        %s177 = ssub.s32 %s27, 1
        // Predicated region
        $region13: #{tpu_custom_call.1} parent=11 // pred_check
          %p178 = pneg %p48
        $region14: #{tpu_custom_call.1} parent=11 // pred_check_branch
          %180 = sbr.rel (%p178) target = $region16
        $region15: #{tpu_custom_call.1} parent=11 // pred_region
          _
        $region16: #{tpu_custom_call.1} parent=11 // pred_fallthru
          _
        // Predicated region
        $region17: #{tpu_custom_call.1} parent=11 // pred_check
          %p181 = pneg %p69
        $region18: #{tpu_custom_call.1} parent=11 // pred_check_branch
          %183 = sbr.rel (%p181) target = $region20
        $region19: #{tpu_custom_call.1} parent=11 // pred_region
          _
        $region20: #{tpu_custom_call.1} parent=11 // pred_fallthru
          _
        // Predicated region
        $region21: #{tpu_custom_call.1} parent=11 // pred_check
          %p184 = pneg %p116
        $region22: #{tpu_custom_call.1} parent=11 // pred_check_branch
          %186 = sbr.rel (%p184) target = $region24
        $region23: #{tpu_custom_call.1} parent=11 // pred_region
          _
        $region24: #{tpu_custom_call.1} parent=11 // pred_fallthru
          _
        // Predicated region
        $region25: #{tpu_custom_call.1} parent=11 // pred_check
          %p187 = pneg %p137
        $region26: #{tpu_custom_call.1} parent=11 // pred_check_branch
          %189 = sbr.rel (%p187) target = $region28
        $region27: #{tpu_custom_call.1} parent=11 // pred_region
          _
        $region28: #{tpu_custom_call.1} parent=11 // pred_fallthru
          _
      $region12: #{tpu_custom_call.1} parent=5 // pred_fallthru
        _
      %p190 = scmp.lt.s32.totalorder %s27, 2
      // Predicated region
      $region29: #{tpu_custom_call.1} parent=5 // pred_check
        %p191 = pneg %p190
      $region30: #{tpu_custom_call.1} parent=5 // pred_check_branch
        %193 = sbr.rel (%p191) target = $region32
      $region31: #{tpu_custom_call.1} parent=5 // pred_region
        // Predicated region
        $region33: #{tpu_custom_call.1} parent=31 // pred_check
          %p194 = pneg %p89
        $region34: #{tpu_custom_call.1} parent=31 // pred_check_branch
          %196 = sbr.rel (%p194) target = $region36
        $region35: #{tpu_custom_call.1} parent=31 // pred_region
          %s197 = smul.u32 16, %s27
          %p198 = scmp.lt.s32.totalorder %s197, 31
          %s199 = scalar_select %p198, %s197, 31
          %s200 = smul.addr %s199, 8
          %s201 = scalar_lea.vmem %s5, %s200
          %s202 = smul.u32 16, %s27
        $region36: #{tpu_custom_call.1} parent=31 // pred_fallthru
          _
      $region32: #{tpu_custom_call.1} parent=5 // pred_fallthru
        _
      %p203 = scmp.le.s32.totalorder 1, %s27
      %p204 = scmp.lt.s32.totalorder %s27, 3
      %p205 = pnand %p203, %p204
      %p206 = pneg %p205
      // Predicated region
      $region37: #{tpu_custom_call.1} parent=5 // pred_check
        _
      $region38: #{tpu_custom_call.1} parent=5 // pred_check_branch
        %208 = sbr.rel (%p205) target = $region40
      $region39: #{tpu_custom_call.1} parent=5 // pred_region
        %s209 = ssub.s32 %s27, 1
        %p210 = pneg %p48
        %p211 = pneg %p45
        %p212 = pneg %p69
        %p213 = pneg %p66
        %s214 = smul.u32 16, %s32
        %p215 = scmp.lt.s32.totalorder %s214, 31
        %s216 = scalar_select %p215, %s214, 31
        %s217 = smul.addr %s216, 8
        %s218 = scalar_lea.vmem %s5, %s217
        %p219 = pneg %p95
        %p220 = pneg %p92
        %p221 = pneg %p116
        %p222 = pneg %p113
        %p223 = pneg %p137
        %p224 = pneg %p134
        %p225 = pneg %p163
        %p226 = pneg %p160
        %s227 = sand.u32 %s150, 1
        %s228 = scalar_lea.sflag [#allocation9], %s227
        %s229 = sand.u32 %s150, 1
        %s230 = smul.addr %s229, 128
        %s231 = scalar_lea.vmem [#allocation8], %s230
        %s232 = smul.u32 16, %s32
        %p233 = scmp.lt.s32.totalorder %s232, 31
        %s234 = scalar_select %p233, %s232, 31
        %s235 = smul.addr %s234, 8
        %s236 = scalar_lea.vmem %s5, %s235
        %s237 = smul.u32 16, %s32
        %s238 = smul.u32 16, %s32
        %s239 = smul.u32 %s32, 128
        loop: start=0, step=1, limit=128
        $region41: #{tpu_custom_call.1} parent=39 // loop_pre_header
          _
        $region42: #{tpu_custom_call.1} parent=39 // loop_header
          %s241 = sphi 0, %s245
          %p242 = scmp.ge.s32.totalorder %s241, 128
        $region43: #{tpu_custom_call.1} parent=39 // loop_header_branch
          %244 = sbr.rel (%p242) target = $region47
        $region44: #{tpu_custom_call.1} parent=39 // loop_body
          %s246 = sadd.s32 %s239, %s241
          %s247 = sld [smem:[#allocation6 + %s246]]
          %p248 = scmp.gt.s32.totalorder %s247, 0
          %s249 = scalar_select %p248, %s247, 0
          %p250 = scmp.lt.s32.totalorder %s249, 63
          %s251 = scalar_select %p250, %s249, 63
          %s252 = scalar_lea.vmem %s2, %s251
          %s253 = scalar_lea.vmem [#allocation2], %s241
          %p255 = scmp.lt.u32.totalorder 1, 8
          %p256 = pneg %p255
          // Predicated region
          $region48: #{tpu_custom_call.1} parent=44 // pred_check
            _
          $region49: #{tpu_custom_call.1} parent=44 // pred_check_branch
            %258 = sbr.rel (%p255) target = $region51
          $region50: #{tpu_custom_call.1} parent=44 // pred_region
            %s273 = sand.u32 1, 7
            %p274 = scmp.eq.s32.totalorder %s273, 0
            %p275 = pneg %p274
            // Predicated region
            $region63: #{tpu_custom_call.1} parent=50 // pred_check
              _
            $region64: #{tpu_custom_call.1} parent=50 // pred_check_branch
              %277 = sbr.rel (%p274) target = $region66
            $region65: #{tpu_custom_call.1} parent=50 // pred_region
              %s278 = sand.u32 1, 7
              %s279 = ssub.s32 1, %s278
              %s280 = scalar_lea.vmem %s252, %s279
              %s281 = ssub.s32 1, %s278
              %s282 = scalar_lea.vmem %s253, %s281 [#allocation2]
              %s283 = sshllo.u32 0, %s278
              loop: start=0, step=1, limit=1
              $region67: #{tpu_custom_call.1} parent=65 // loop_pre_header
                _
              $region68: #{tpu_custom_call.1} parent=65 // loop_header
                %s285 = sphi 0, %s289
                %p286 = scmp.ge.s32.totalorder %s285, 1
                %s290 = sphi %s280, %s280
                %s291 = sphi %s282, %s282
              $region69: #{tpu_custom_call.1} parent=65 // loop_header_branch
                %288 = sbr.rel (%p286) target = $region73
              $region70: #{tpu_custom_call.1} parent=65 // loop_body
                %v292 = vld [vmem:[%s290] sm:%s283]
                %293 = vst [vmem:[%s291] sm:%s283] %v292
              $region71: #{tpu_custom_call.1} parent=65 // loop_footer
                %s289 = sadd.s32 1, %s285
              $region72: #{tpu_custom_call.1} parent=65 // loop_footer_branch
                %284 = sbr.rel target = $region68
              $region73: #{tpu_custom_call.1} parent=65 // loop_exit
                _
            $region66: #{tpu_custom_call.1} parent=50 // pred_fallthru
              _
          $region51: #{tpu_custom_call.1} parent=44 // pred_fallthru
            _
          // Predicated region
          $region52: #{tpu_custom_call.1} parent=44 // pred_check
            %p259 = pneg %p255
          $region53: #{tpu_custom_call.1} parent=44 // pred_check_branch
            %261 = sbr.rel (%p259) target = $region55
          $region54: #{tpu_custom_call.1} parent=44 // pred_region
            %s262 = sshllo.u32 0, 1
            loop: start=0, step=1, limit=1
            $region56: #{tpu_custom_call.1} parent=54 // loop_pre_header
              _
            $region57: #{tpu_custom_call.1} parent=54 // loop_header
              %s264 = sphi 0, %s268
              %p265 = scmp.ge.s32.totalorder %s264, 1
              %s269 = sphi %s252, %s252
              %s270 = sphi %s253, %s253
            $region58: #{tpu_custom_call.1} parent=54 // loop_header_branch
              %267 = sbr.rel (%p265) target = $region62
            $region59: #{tpu_custom_call.1} parent=54 // loop_body
              %v271 = vld [vmem:[%s269] sm:%s262]
              %272 = vst [vmem:[%s270] sm:%s262] %v271
            $region60: #{tpu_custom_call.1} parent=54 // loop_footer
              %s268 = sadd.s32 1, %s264
            $region61: #{tpu_custom_call.1} parent=54 // loop_footer_branch
              %263 = sbr.rel target = $region57
            $region62: #{tpu_custom_call.1} parent=54 // loop_exit
              _
          $region55: #{tpu_custom_call.1} parent=44 // pred_fallthru
            _
          // Predicated region
          $region74: #{tpu_custom_call.1} parent=44 // pred_check
            _
          $region75: #{tpu_custom_call.1} parent=44 // pred_check_branch
            %296 = sbr.rel (0) target = $region77
          $region76: #{tpu_custom_call.1} parent=44 // pred_region
            %297 = vsyncadd [#allocation4], 16
          $region77: #{tpu_custom_call.1} parent=44 // pred_fallthru
            _
        $region45: #{tpu_custom_call.1} parent=39 // loop_footer
          %s245 = sadd.s32 1, %s241
        $region46: #{tpu_custom_call.1} parent=39 // loop_footer_branch
          %240 = sbr.rel target = $region42
        $region47: #{tpu_custom_call.1} parent=39 // loop_exit
          _
        loop: start=0, step=1, limit=128
        $region78: #{tpu_custom_call.1} parent=39 // loop_pre_header
          _
        $region79: #{tpu_custom_call.1} parent=39 // loop_header
          %s299 = sphi 0, %s303
          %p300 = scmp.ge.s32.totalorder %s299, 128
        $region80: #{tpu_custom_call.1} parent=39 // loop_header_branch
          %302 = sbr.rel (%p300) target = $region84
        $region81: #{tpu_custom_call.1} parent=39 // loop_body
          %s304 = sadd.s32 %s239, %s299
          %s305 = sld [smem:[#allocation7 + %s304]]
          %p306 = scmp.gt.s32.totalorder %s305, 0
          %s307 = scalar_select %p306, %s305, 0
          %p308 = scmp.lt.s32.totalorder %s307, 63
          %s309 = scalar_select %p308, %s307, 63
          %s310 = scalar_lea.vmem %s4, %s309
          %v311 = vld [vmem:[%s310] sm:$0x1]
          %s312 = scalar_lea.vmem [#allocation3], %s299
          %313 = vst [vmem:[%s312] sm:$0x1] %v311
        $region82: #{tpu_custom_call.1} parent=39 // loop_footer
          %s303 = sadd.s32 1, %s299
        $region83: #{tpu_custom_call.1} parent=39 // loop_footer_branch
          %298 = sbr.rel target = $region79
        $region84: #{tpu_custom_call.1} parent=39 // loop_exit
          _
        %v314 = vld [vmem:[%s236] sm:$0xff]
        %v315 = vld [vmem:[%s236 + $0x8] sm:$0xff]
        %v316 = vld [vmem:[%s236 + $0x10] sm:$0xff]
        %v317 = vld [vmem:[%s236 + $0x18] sm:$0xff]
        %v318 = vld [vmem:[%s236 + $0x20] sm:$0xff]
        %v319 = vld [vmem:[%s236 + $0x28] sm:$0xff]
        %v320 = vld [vmem:[%s236 + $0x30] sm:$0xff]
        %v321 = vld [vmem:[%s236 + $0x38] sm:$0xff]
        %v322 = vld [vmem:[%s236 + $0x40] sm:$0xff]
        %v323 = vld [vmem:[%s236 + $0x48] sm:$0xff]
        %v324 = vld [vmem:[%s236 + $0x50] sm:$0xff]
        %v325 = vld [vmem:[%s236 + $0x58] sm:$0xff]
        %v326 = vld [vmem:[%s236 + $0x60] sm:$0xff]
        %v327 = vld [vmem:[%s236 + $0x68] sm:$0xff]
        %v328 = vld [vmem:[%s236 + $0x70] sm:$0xff]
        %v329 = vld [vmem:[%s236 + $0x78] sm:$0xff]
        %v330 = vld [vmem:[%s3] sm:$0x1]
        %vm331 = vcmp.eq.s32.totalorder %v314, 0
        %vm332 = vcmp.eq.s32.totalorder %v315, 0
        %vm333 = vcmp.eq.s32.totalorder %v316, 0
        %vm334 = vcmp.eq.s32.totalorder %v317, 0
        %vm335 = vcmp.eq.s32.totalorder %v318, 0
        %vm336 = vcmp.eq.s32.totalorder %v319, 0
        %vm337 = vcmp.eq.s32.totalorder %v320, 0
        %vm338 = vcmp.eq.s32.totalorder %v321, 0
        %vm339 = vcmp.eq.s32.totalorder %v322, 0
        %vm340 = vcmp.eq.s32.totalorder %v323, 0
        %vm341 = vcmp.eq.s32.totalorder %v324, 0
        %vm342 = vcmp.eq.s32.totalorder %v325, 0
        %vm343 = vcmp.eq.s32.totalorder %v326, 0
        %vm344 = vcmp.eq.s32.totalorder %v327, 0
        %vm345 = vcmp.eq.s32.totalorder %v328, 0
        %vm346 = vcmp.eq.s32.totalorder %v329, 0
        %v347 = vsel %vm331, 1, 0
        %v348 = vsel %vm332, 1, 0
        %v349 = vsel %vm333, 1, 0
        %v350 = vsel %vm334, 1, 0
        %v351 = vsel %vm335, 1, 0
        %v352 = vsel %vm336, 1, 0
        %v353 = vsel %vm337, 1, 0
        %v354 = vsel %vm338, 1, 0
        %v355 = vsel %vm339, 1, 0
        %v356 = vsel %vm340, 1, 0
        %v357 = vsel %vm341, 1, 0
        %v358 = vsel %vm342, 1, 0
        %v359 = vsel %vm343, 1, 0
        %v360 = vsel %vm344, 1, 0
        %v361 = vsel %vm345, 1, 0
        %v362 = vsel %vm346, 1, 0
        %363 = vset.pattern.permute.xlu0 0
        %364 = vperm.xlu0 %363, %v347
        %v365 = vpop.permute.xlu0 %364
        %366 = vset.pattern.permute.xlu0 0
        %367 = vperm.xlu0 %366, %v348
        %v368 = vpop.permute.xlu0 %367
        %369 = vset.pattern.permute.xlu0 0
        %370 = vperm.xlu0 %369, %v349
        %v371 = vpop.permute.xlu0 %370
        %372 = vset.pattern.permute.xlu0 0
        %373 = vperm.xlu0 %372, %v350
        %v374 = vpop.permute.xlu0 %373
        %375 = vset.pattern.permute.xlu0 0
        %376 = vperm.xlu0 %375, %v351
        %v377 = vpop.permute.xlu0 %376
        %378 = vset.pattern.permute.xlu0 0
        %379 = vperm.xlu0 %378, %v352
        %v380 = vpop.permute.xlu0 %379
        %381 = vset.pattern.permute.xlu0 0
        %382 = vperm.xlu0 %381, %v353
        %v383 = vpop.permute.xlu0 %382
        %384 = vset.pattern.permute.xlu0 0
        %385 = vperm.xlu0 %384, %v354
        %v386 = vpop.permute.xlu0 %385
        %387 = vset.pattern.permute.xlu0 0
        %388 = vperm.xlu0 %387, %v355
        %v389 = vpop.permute.xlu0 %388
        %390 = vset.pattern.permute.xlu0 0
        %391 = vperm.xlu0 %390, %v356
        %v392 = vpop.permute.xlu0 %391
        %393 = vset.pattern.permute.xlu0 0
        %394 = vperm.xlu0 %393, %v357
        %v395 = vpop.permute.xlu0 %394
        %396 = vset.pattern.permute.xlu0 0
        %397 = vperm.xlu0 %396, %v358
        %v398 = vpop.permute.xlu0 %397
        %399 = vset.pattern.permute.xlu0 0
        %400 = vperm.xlu0 %399, %v359
        %v401 = vpop.permute.xlu0 %400
        %402 = vset.pattern.permute.xlu0 0
        %403 = vperm.xlu0 %402, %v360
        %v404 = vpop.permute.xlu0 %403
        %405 = vset.pattern.permute.xlu0 0
        %406 = vperm.xlu0 %405, %v361
        %v407 = vpop.permute.xlu0 %406
        %408 = vset.pattern.permute.xlu0 0
        %409 = vperm.xlu0 %408, %v362
        %v410 = vpop.permute.xlu0 %409
        %vm411 = vcmp.eq.s32.totalorder %v365, 1
        %vm412 = vcmp.eq.s32.totalorder %v368, 1
        %vm413 = vcmp.eq.s32.totalorder %v371, 1
        %vm414 = vcmp.eq.s32.totalorder %v374, 1
        %vm415 = vcmp.eq.s32.totalorder %v377, 1
        %vm416 = vcmp.eq.s32.totalorder %v380, 1
        %vm417 = vcmp.eq.s32.totalorder %v383, 1
        %vm418 = vcmp.eq.s32.totalorder %v386, 1
        %vm419 = vcmp.eq.s32.totalorder %v389, 1
        %vm420 = vcmp.eq.s32.totalorder %v392, 1
        %vm421 = vcmp.eq.s32.totalorder %v395, 1
        %vm422 = vcmp.eq.s32.totalorder %v398, 1
        %vm423 = vcmp.eq.s32.totalorder %v401, 1
        %vm424 = vcmp.eq.s32.totalorder %v404, 1
        %vm425 = vcmp.eq.s32.totalorder %v407, 1
        %vm426 = vcmp.eq.s32.totalorder %v410, 1
        %v427 = vlaneseq
        %v428 = vshrl.u32 %v427, 7
        %v429 = vsub.s32 0, %v428
        %v430 = vrot.slane %v330, %v429
        %v431 = vsel %vm411, %v430, 0.0
        %v432 = vsel %vm412, %v430, 0.0
        %v433 = vsel %vm413, %v430, 0.0
        %v434 = vsel %vm414, %v430, 0.0
        %v435 = vsel %vm415, %v430, 0.0
        %v436 = vsel %vm416, %v430, 0.0
        %v437 = vsel %vm417, %v430, 0.0
        %v438 = vsel %vm418, %v430, 0.0
        %v439 = vsel %vm419, %v430, 0.0
        %v440 = vsel %vm420, %v430, 0.0
        %v441 = vsel %vm421, %v430, 0.0
        %v442 = vsel %vm422, %v430, 0.0
        %v443 = vsel %vm423, %v430, 0.0
        %v444 = vsel %vm424, %v430, 0.0
        %v445 = vsel %vm425, %v430, 0.0
        %v446 = vsel %vm426, %v430, 0.0
        %v447 = vld [vmem:[%s3 + $0x1] sm:$0x1]
        %vm448 = vcmp.eq.s32.totalorder %v314, 1
        %vm449 = vcmp.eq.s32.totalorder %v315, 1
        %vm450 = vcmp.eq.s32.totalorder %v316, 1
        %vm451 = vcmp.eq.s32.totalorder %v317, 1
        %vm452 = vcmp.eq.s32.totalorder %v318, 1
        %vm453 = vcmp.eq.s32.totalorder %v319, 1
        %vm454 = vcmp.eq.s32.totalorder %v320, 1
        %vm455 = vcmp.eq.s32.totalorder %v321, 1
        %vm456 = vcmp.eq.s32.totalorder %v322, 1
        %vm457 = vcmp.eq.s32.totalorder %v323, 1
        %vm458 = vcmp.eq.s32.totalorder %v324, 1
        %vm459 = vcmp.eq.s32.totalorder %v325, 1
        %vm460 = vcmp.eq.s32.totalorder %v326, 1
        %vm461 = vcmp.eq.s32.totalorder %v327, 1
        %vm462 = vcmp.eq.s32.totalorder %v328, 1
        %vm463 = vcmp.eq.s32.totalorder %v329, 1
        %v464 = vsel %vm448, 1, 0
        %v465 = vsel %vm449, 1, 0
        %v466 = vsel %vm450, 1, 0
        %v467 = vsel %vm451, 1, 0
        %v468 = vsel %vm452, 1, 0
        %v469 = vsel %vm453, 1, 0
        %v470 = vsel %vm454, 1, 0
        %v471 = vsel %vm455, 1, 0
        %v472 = vsel %vm456, 1, 0
        %v473 = vsel %vm457, 1, 0
        %v474 = vsel %vm458, 1, 0
        %v475 = vsel %vm459, 1, 0
        %v476 = vsel %vm460, 1, 0
        %v477 = vsel %vm461, 1, 0
        %v478 = vsel %vm462, 1, 0
        %v479 = vsel %vm463, 1, 0
        %480 = vset.pattern.permute.xlu0 0
        %481 = vperm.xlu0 %480, %v464
        %v482 = vpop.permute.xlu0 %481
        %483 = vset.pattern.permute.xlu0 0
        %484 = vperm.xlu0 %483, %v465
        %v485 = vpop.permute.xlu0 %484
        %486 = vset.pattern.permute.xlu0 0
        %487 = vperm.xlu0 %486, %v466
        %v488 = vpop.permute.xlu0 %487
        %489 = vset.pattern.permute.xlu0 0
        %490 = vperm.xlu0 %489, %v467
        %v491 = vpop.permute.xlu0 %490
        %492 = vset.pattern.permute.xlu0 0
        %493 = vperm.xlu0 %492, %v468
        %v494 = vpop.permute.xlu0 %493
        %495 = vset.pattern.permute.xlu0 0
        %496 = vperm.xlu0 %495, %v469
        %v497 = vpop.permute.xlu0 %496
        %498 = vset.pattern.permute.xlu0 0
        %499 = vperm.xlu0 %498, %v470
        %v500 = vpop.permute.xlu0 %499
        %501 = vset.pattern.permute.xlu0 0
        %502 = vperm.xlu0 %501, %v471
        %v503 = vpop.permute.xlu0 %502
        %504 = vset.pattern.permute.xlu0 0
        %505 = vperm.xlu0 %504, %v472
        %v506 = vpop.permute.xlu0 %505
        %507 = vset.pattern.permute.xlu0 0
        %508 = vperm.xlu0 %507, %v473
        %v509 = vpop.permute.xlu0 %508
        %510 = vset.pattern.permute.xlu0 0
        %511 = vperm.xlu0 %510, %v474
        %v512 = vpop.permute.xlu0 %511
        %513 = vset.pattern.permute.xlu0 0
        %514 = vperm.xlu0 %513, %v475
        %v515 = vpop.permute.xlu0 %514
        %516 = vset.pattern.permute.xlu0 0
        %517 = vperm.xlu0 %516, %v476
        %v518 = vpop.permute.xlu0 %517
        %519 = vset.pattern.permute.xlu0 0
        %520 = vperm.xlu0 %519, %v477
        %v521 = vpop.permute.xlu0 %520
        %522 = vset.pattern.permute.xlu0 0
        %523 = vperm.xlu0 %522, %v478
        %v524 = vpop.permute.xlu0 %523
        %525 = vset.pattern.permute.xlu0 0
        %526 = vperm.xlu0 %525, %v479
        %v527 = vpop.permute.xlu0 %526
        %vm528 = vcmp.eq.s32.totalorder %v482, 1
        %vm529 = vcmp.eq.s32.totalorder %v485, 1
        %vm530 = vcmp.eq.s32.totalorder %v488, 1
        %vm531 = vcmp.eq.s32.totalorder %v491, 1
        %vm532 = vcmp.eq.s32.totalorder %v494, 1
        %vm533 = vcmp.eq.s32.totalorder %v497, 1
        %vm534 = vcmp.eq.s32.totalorder %v500, 1
        %vm535 = vcmp.eq.s32.totalorder %v503, 1
        %vm536 = vcmp.eq.s32.totalorder %v506, 1
        %vm537 = vcmp.eq.s32.totalorder %v509, 1
        %vm538 = vcmp.eq.s32.totalorder %v512, 1
        %vm539 = vcmp.eq.s32.totalorder %v515, 1
        %vm540 = vcmp.eq.s32.totalorder %v518, 1
        %vm541 = vcmp.eq.s32.totalorder %v521, 1
        %vm542 = vcmp.eq.s32.totalorder %v524, 1
        %vm543 = vcmp.eq.s32.totalorder %v527, 1
        %v544 = vlaneseq
        %v545 = vshrl.u32 %v544, 7
        %v546 = vsub.s32 0, %v545
        %v547 = vrot.slane %v447, %v546
        %v548 = vsel %vm528, %v547, %v431
        %v549 = vsel %vm529, %v547, %v432
        %v550 = vsel %vm530, %v547, %v433
        %v551 = vsel %vm531, %v547, %v434
        %v552 = vsel %vm532, %v547, %v435
        %v553 = vsel %vm533, %v547, %v436
        %v554 = vsel %vm534, %v547, %v437
        %v555 = vsel %vm535, %v547, %v438
        %v556 = vsel %vm536, %v547, %v439
        %v557 = vsel %vm537, %v547, %v440
        %v558 = vsel %vm538, %v547, %v441
        %v559 = vsel %vm539, %v547, %v442
        %v560 = vsel %vm540, %v547, %v443
        %v561 = vsel %vm541, %v547, %v444
        %v562 = vsel %vm542, %v547, %v445
        %v563 = vsel %vm543, %v547, %v446
        %s564 = smul.u32 128, 1
        %s565 = sshll.u32 %s564, 4
        %566 = dma.done [#allocation4], %s565
        %v567 = vld [vmem:[#allocation2] sm:$0xff]
        %v568 = vld [vmem:[#allocation2 + $0x8] sm:$0xff]
        %v569 = vld [vmem:[#allocation2 + $0x10] sm:$0xff]
        %v570 = vld [vmem:[#allocation2 + $0x18] sm:$0xff]
        %v571 = vld [vmem:[#allocation2 + $0x20] sm:$0xff]
        %v572 = vld [vmem:[#allocation2 + $0x28] sm:$0xff]
        %v573 = vld [vmem:[#allocation2 + $0x30] sm:$0xff]
        %v574 = vld [vmem:[#allocation2 + $0x38] sm:$0xff]
        %v575 = vld [vmem:[#allocation2 + $0x40] sm:$0xff]
        %v576 = vld [vmem:[#allocation2 + $0x48] sm:$0xff]
        %v577 = vld [vmem:[#allocation2 + $0x50] sm:$0xff]
        %v578 = vld [vmem:[#allocation2 + $0x58] sm:$0xff]
        %v579 = vld [vmem:[#allocation2 + $0x60] sm:$0xff]
        %v580 = vld [vmem:[#allocation2 + $0x68] sm:$0xff]
        %v581 = vld [vmem:[#allocation2 + $0x70] sm:$0xff]
        %v582 = vld [vmem:[#allocation2 + $0x78] sm:$0xff]
        %v583 = vmul.f32 %v567, 11.313708
        %v584 = vmul.f32 %v568, 11.313708
        %v585 = vmul.f32 %v569, 11.313708
        %v586 = vmul.f32 %v570, 11.313708
        %v587 = vmul.f32 %v571, 11.313708
        %v588 = vmul.f32 %v572, 11.313708
        %v589 = vmul.f32 %v573, 11.313708
        %v590 = vmul.f32 %v574, 11.313708
        %v591 = vmul.f32 %v575, 11.313708
        %v592 = vmul.f32 %v576, 11.313708
        %v593 = vmul.f32 %v577, 11.313708
        %v594 = vmul.f32 %v578, 11.313708
        %v595 = vmul.f32 %v579, 11.313708
        %v596 = vmul.f32 %v580, 11.313708
        %v597 = vmul.f32 %v581, 11.313708
        %v598 = vmul.f32 %v582, 11.313708
        %v599 = vadd.f32 %v583, %v548
        %v600 = vadd.f32 %v584, %v549
        %v601 = vadd.f32 %v585, %v550
        %v602 = vadd.f32 %v586, %v551
        %v603 = vadd.f32 %v587, %v552
        %v604 = vadd.f32 %v588, %v553
        %v605 = vadd.f32 %v589, %v554
        %v606 = vadd.f32 %v590, %v555
        %v607 = vadd.f32 %v591, %v556
        %v608 = vadd.f32 %v592, %v557
        %v609 = vadd.f32 %v593, %v558
        %v610 = vadd.f32 %v594, %v559
        %v611 = vadd.f32 %v595, %v560
        %v612 = vadd.f32 %v596, %v561
        %v613 = vadd.f32 %v597, %v562
        %v614 = vadd.f32 %v598, %v563
        %v615 = vld [vmem:[#allocation3] sm:$0xff]
        %v616 = vld [vmem:[#allocation3 + $0x8] sm:$0xff]
        %v617 = vld [vmem:[#allocation3 + $0x10] sm:$0xff]
        %v618 = vld [vmem:[#allocation3 + $0x18] sm:$0xff]
        %v619 = vld [vmem:[#allocation3 + $0x20] sm:$0xff]
        %v620 = vld [vmem:[#allocation3 + $0x28] sm:$0xff]
        %v621 = vld [vmem:[#allocation3 + $0x30] sm:$0xff]
        %v622 = vld [vmem:[#allocation3 + $0x38] sm:$0xff]
        %v623 = vld [vmem:[#allocation3 + $0x40] sm:$0xff]
        %v624 = vld [vmem:[#allocation3 + $0x48] sm:$0xff]
        %v625 = vld [vmem:[#allocation3 + $0x50] sm:$0xff]
        %v626 = vld [vmem:[#allocation3 + $0x58] sm:$0xff]
        %v627 = vld [vmem:[#allocation3 + $0x60] sm:$0xff]
        %v628 = vld [vmem:[#allocation3 + $0x68] sm:$0xff]
        %v629 = vld [vmem:[#allocation3 + $0x70] sm:$0xff]
        %v630 = vld [vmem:[#allocation3 + $0x78] sm:$0xff]
        %v631 = vadd.f32 %v599, %v615
        %v632 = vadd.f32 %v600, %v616
        %v633 = vadd.f32 %v601, %v617
        %v634 = vadd.f32 %v602, %v618
        %v635 = vadd.f32 %v603, %v619
        %v636 = vadd.f32 %v604, %v620
        %v637 = vadd.f32 %v605, %v621
        %v638 = vadd.f32 %v606, %v622
        %v639 = vadd.f32 %v607, %v623
        %v640 = vadd.f32 %v608, %v624
        %v641 = vadd.f32 %v609, %v625
        %v642 = vadd.f32 %v610, %v626
        %v643 = vadd.f32 %v611, %v627
        %v644 = vadd.f32 %v612, %v628
        %v645 = vadd.f32 %v613, %v629
        %v646 = vadd.f32 %v614, %v630
        %647 = vadd.xlane.f32.xlu0 %v631
        %v648 = vpop.xlane.xlu0 %647
        %649 = vadd.xlane.f32.xlu0 %v632
        %v650 = vpop.xlane.xlu0 %649
        %651 = vadd.xlane.f32.xlu0 %v633
        %v652 = vpop.xlane.xlu0 %651
        %653 = vadd.xlane.f32.xlu0 %v634
        %v654 = vpop.xlane.xlu0 %653
        %655 = vadd.xlane.f32.xlu0 %v635
        %v656 = vpop.xlane.xlu0 %655
        %657 = vadd.xlane.f32.xlu0 %v636
        %v658 = vpop.xlane.xlu0 %657
        %659 = vadd.xlane.f32.xlu0 %v637
        %v660 = vpop.xlane.xlu0 %659
        %661 = vadd.xlane.f32.xlu0 %v638
        %v662 = vpop.xlane.xlu0 %661
        %663 = vadd.xlane.f32.xlu0 %v639
        %v664 = vpop.xlane.xlu0 %663
        %665 = vadd.xlane.f32.xlu0 %v640
        %v666 = vpop.xlane.xlu0 %665
        %667 = vadd.xlane.f32.xlu0 %v641
        %v668 = vpop.xlane.xlu0 %667
        %669 = vadd.xlane.f32.xlu0 %v642
        %v670 = vpop.xlane.xlu0 %669
        %671 = vadd.xlane.f32.xlu0 %v643
        %v672 = vpop.xlane.xlu0 %671
        %673 = vadd.xlane.f32.xlu0 %v644
        %v674 = vpop.xlane.xlu0 %673
        %675 = vadd.xlane.f32.xlu0 %v645
        %v676 = vpop.xlane.xlu0 %675
        %677 = vadd.xlane.f32.xlu0 %v646
        %v678 = vpop.xlane.xlu0 %677
        %v679 = vrcp.pop 128.0
        %v680 = vmul.f32 %v648, %v679
        %v681 = vmul.f32 %v650, %v679
        %v682 = vmul.f32 %v652, %v679
        %v683 = vmul.f32 %v654, %v679
        %v684 = vmul.f32 %v656, %v679
        %v685 = vmul.f32 %v658, %v679
        %v686 = vmul.f32 %v660, %v679
        %v687 = vmul.f32 %v662, %v679
        %v688 = vmul.f32 %v664, %v679
        %v689 = vmul.f32 %v666, %v679
        %v690 = vmul.f32 %v668, %v679
        %v691 = vmul.f32 %v670, %v679
        %v692 = vmul.f32 %v672, %v679
        %v693 = vmul.f32 %v674, %v679
        %v694 = vmul.f32 %v676, %v679
        %v695 = vmul.f32 %v678, %v679
        %v696 = vsub.f32 %v631, %v680
        %v697 = vsub.f32 %v632, %v681
        %v698 = vsub.f32 %v633, %v682
        %v699 = vsub.f32 %v634, %v683
        %v700 = vsub.f32 %v635, %v684
        %v701 = vsub.f32 %v636, %v685
        %v702 = vsub.f32 %v637, %v686
        %v703 = vsub.f32 %v638, %v687
        %v704 = vsub.f32 %v639, %v688
        %v705 = vsub.f32 %v640, %v689
        %v706 = vsub.f32 %v641, %v690
        %v707 = vsub.f32 %v642, %v691
        %v708 = vsub.f32 %v643, %v692
        %v709 = vsub.f32 %v644, %v693
        %v710 = vsub.f32 %v645, %v694
        %v711 = vsub.f32 %v646, %v695
        %v712 = vmul.f32 %v696, %v696
        %v713 = vmul.f32 %v697, %v697
        %v714 = vmul.f32 %v698, %v698
        %v715 = vmul.f32 %v699, %v699
        %v716 = vmul.f32 %v700, %v700
        %v717 = vmul.f32 %v701, %v701
        %v718 = vmul.f32 %v702, %v702
        %v719 = vmul.f32 %v703, %v703
        %v720 = vmul.f32 %v704, %v704
        %v721 = vmul.f32 %v705, %v705
        %v722 = vmul.f32 %v706, %v706
        %v723 = vmul.f32 %v707, %v707
        %v724 = vmul.f32 %v708, %v708
        %v725 = vmul.f32 %v709, %v709
        %v726 = vmul.f32 %v710, %v710
        %v727 = vmul.f32 %v711, %v711
        %728 = vadd.xlane.f32.xlu0 %v712
        %v729 = vpop.xlane.xlu0 %728
        %730 = vadd.xlane.f32.xlu0 %v713
        %v731 = vpop.xlane.xlu0 %730
        %732 = vadd.xlane.f32.xlu0 %v714
        %v733 = vpop.xlane.xlu0 %732
        %734 = vadd.xlane.f32.xlu0 %v715
        %v735 = vpop.xlane.xlu0 %734
        %736 = vadd.xlane.f32.xlu0 %v716
        %v737 = vpop.xlane.xlu0 %736
        %738 = vadd.xlane.f32.xlu0 %v717
        %v739 = vpop.xlane.xlu0 %738
        %740 = vadd.xlane.f32.xlu0 %v718
        %v741 = vpop.xlane.xlu0 %740
        %742 = vadd.xlane.f32.xlu0 %v719
        %v743 = vpop.xlane.xlu0 %742
        %744 = vadd.xlane.f32.xlu0 %v720
        %v745 = vpop.xlane.xlu0 %744
        %746 = vadd.xlane.f32.xlu0 %v721
        %v747 = vpop.xlane.xlu0 %746
        %748 = vadd.xlane.f32.xlu0 %v722
        %v749 = vpop.xlane.xlu0 %748
        %750 = vadd.xlane.f32.xlu0 %v723
        %v751 = vpop.xlane.xlu0 %750
        %752 = vadd.xlane.f32.xlu0 %v724
        %v753 = vpop.xlane.xlu0 %752
        %754 = vadd.xlane.f32.xlu0 %v725
        %v755 = vpop.xlane.xlu0 %754
        %756 = vadd.xlane.f32.xlu0 %v726
        %v757 = vpop.xlane.xlu0 %756
        %758 = vadd.xlane.f32.xlu0 %v727
        %v759 = vpop.xlane.xlu0 %758
        %v760 = vmul.f32 %v729, %v679
        %v761 = vmul.f32 %v731, %v679
        %v762 = vmul.f32 %v733, %v679
        %v763 = vmul.f32 %v735, %v679
        %v764 = vmul.f32 %v737, %v679
        %v765 = vmul.f32 %v739, %v679
        %v766 = vmul.f32 %v741, %v679
        %v767 = vmul.f32 %v743, %v679
        %v768 = vmul.f32 %v745, %v679
        %v769 = vmul.f32 %v747, %v679
        %v770 = vmul.f32 %v749, %v679
        %v771 = vmul.f32 %v751, %v679
        %v772 = vmul.f32 %v753, %v679
        %v773 = vmul.f32 %v755, %v679
        %v774 = vmul.f32 %v757, %v679
        %v775 = vmul.f32 %v759, %v679
        %v776 = vadd.f32 %v760, 1e-05
        %v777 = vadd.f32 %v761, 1e-05
        %v778 = vadd.f32 %v762, 1e-05
        %v779 = vadd.f32 %v763, 1e-05
        %v780 = vadd.f32 %v764, 1e-05
        %v781 = vadd.f32 %v765, 1e-05
        %v782 = vadd.f32 %v766, 1e-05
        %v783 = vadd.f32 %v767, 1e-05
        %v784 = vadd.f32 %v768, 1e-05
        %v785 = vadd.f32 %v769, 1e-05
        %v786 = vadd.f32 %v770, 1e-05
        %v787 = vadd.f32 %v771, 1e-05
        %v788 = vadd.f32 %v772, 1e-05
        %v789 = vadd.f32 %v773, 1e-05
        %v790 = vadd.f32 %v774, 1e-05
        %v791 = vadd.f32 %v775, 1e-05
        %v792 = vrsqrt.pop %v776
        %v793 = vrsqrt.pop %v777
        %v794 = vrsqrt.pop %v778
        %v795 = vrsqrt.pop %v779
        %v796 = vrsqrt.pop %v780
        %v797 = vrsqrt.pop %v781
        %v798 = vrsqrt.pop %v782
        %v799 = vrsqrt.pop %v783
        %v800 = vrsqrt.pop %v784
        %v801 = vrsqrt.pop %v785
        %v802 = vrsqrt.pop %v786
        %v803 = vrsqrt.pop %v787
        %v804 = vrsqrt.pop %v788
        %v805 = vrsqrt.pop %v789
        %v806 = vrsqrt.pop %v790
        %v807 = vrsqrt.pop %v791
        %v808 = vmul.f32 %v696, %v792
        %v809 = vmul.f32 %v697, %v793
        %v810 = vmul.f32 %v698, %v794
        %v811 = vmul.f32 %v699, %v795
        %v812 = vmul.f32 %v700, %v796
        %v813 = vmul.f32 %v701, %v797
        %v814 = vmul.f32 %v702, %v798
        %v815 = vmul.f32 %v703, %v799
        %v816 = vmul.f32 %v704, %v800
        %v817 = vmul.f32 %v705, %v801
        %v818 = vmul.f32 %v706, %v802
        %v819 = vmul.f32 %v707, %v803
        %v820 = vmul.f32 %v708, %v804
        %v821 = vmul.f32 %v709, %v805
        %v822 = vmul.f32 %v710, %v806
        %v823 = vmul.f32 %v711, %v807
        %v824 = vld [vmem:[%s6] sm:$0x1]
        %v826 = vlaneseq
        %v827 = vshrl.u32 %v826, 7
        %v828 = vsub.s32 0, %v827
        %v829 = vrot.slane %v824, %v828
        %v831 = vmul.f32 %v808, %v829
        %v832 = vmul.f32 %v809, %v829
        %v833 = vmul.f32 %v810, %v829
        %v834 = vmul.f32 %v811, %v829
        %v835 = vmul.f32 %v812, %v829
        %v836 = vmul.f32 %v813, %v829
        %v837 = vmul.f32 %v814, %v829
        %v838 = vmul.f32 %v815, %v829
        %v839 = vmul.f32 %v816, %v829
        %v840 = vmul.f32 %v817, %v829
        %v841 = vmul.f32 %v818, %v829
        %v842 = vmul.f32 %v819, %v829
        %v843 = vmul.f32 %v820, %v829
        %v844 = vmul.f32 %v821, %v829
        %v845 = vmul.f32 %v822, %v829
        %v846 = vmul.f32 %v823, %v829
        %v847 = vld [vmem:[%s7] sm:$0x1]
        %v849 = vlaneseq
        %v850 = vshrl.u32 %v849, 7
        %v851 = vsub.s32 0, %v850
        %v852 = vrot.slane %v847, %v851
        %v854 = vadd.f32 %v831, %v852
        %v855 = vadd.f32 %v832, %v852
        %v856 = vadd.f32 %v833, %v852
        %v857 = vadd.f32 %v834, %v852
        %v858 = vadd.f32 %v835, %v852
        %v859 = vadd.f32 %v836, %v852
        %v860 = vadd.f32 %v837, %v852
        %v861 = vadd.f32 %v838, %v852
        %v862 = vadd.f32 %v839, %v852
        %v863 = vadd.f32 %v840, %v852
        %v864 = vadd.f32 %v841, %v852
        %v865 = vadd.f32 %v842, %v852
        %v866 = vadd.f32 %v843, %v852
        %v867 = vadd.f32 %v844, %v852
        %v868 = vadd.f32 %v845, %v852
        %v869 = vadd.f32 %v846, %v852
        %870 = vst [vmem:[%s231] sm:$0xff] %v854
        %871 = vst [vmem:[%s231 + $0x8] sm:$0xff] %v855
        %872 = vst [vmem:[%s231 + $0x10] sm:$0xff] %v856
        %873 = vst [vmem:[%s231 + $0x18] sm:$0xff] %v857
        %874 = vst [vmem:[%s231 + $0x20] sm:$0xff] %v858
        %875 = vst [vmem:[%s231 + $0x28] sm:$0xff] %v859
        %876 = vst [vmem:[%s231 + $0x30] sm:$0xff] %v860
        %877 = vst [vmem:[%s231 + $0x38] sm:$0xff] %v861
        %878 = vst [vmem:[%s231 + $0x40] sm:$0xff] %v862
        %879 = vst [vmem:[%s231 + $0x48] sm:$0xff] %v863
        %880 = vst [vmem:[%s231 + $0x50] sm:$0xff] %v864
        %881 = vst [vmem:[%s231 + $0x58] sm:$0xff] %v865
        %882 = vst [vmem:[%s231 + $0x60] sm:$0xff] %v866
        %883 = vst [vmem:[%s231 + $0x68] sm:$0xff] %v867
        %884 = vst [vmem:[%s231 + $0x70] sm:$0xff] %v868
        %885 = vst [vmem:[%s231 + $0x78] sm:$0xff] %v869
        %s886 = sand.u32 %s150, 1
        %s887 = scalar_lea.sflag [#allocation9], %s886
        %s888 = sand.u32 %s150, 1
        %s889 = smul.addr %s888, 128
        %s890 = scalar_lea.vmem [#allocation8], %s889
        // Predicated region
        $region85: #{tpu_custom_call.1} parent=39 // pred_check
          %p891 = pneg %p160
        $region86: #{tpu_custom_call.1} parent=39 // pred_check_branch
          %893 = sbr.rel (%p891) target = $region88
        $region87: #{tpu_custom_call.1} parent=39 // pred_region
          %s894 = smul.u32 16, %s32
          %s896 = ssub.s32 2048, 2048
          %897 = vsyncadd %s887, %s896
          %s898 = smul.addr %s894, 128
          %s899 = scalar_lea.hbm %s8, %s898
          %s900 = sshll.u32 %s890, 4
          %s901 = int_to_ptr.vmem [resolvable:$true] %s900
          %906 = dma.vmem_to_hbm [thread:$0]  %s901, 2048, %s899, %s887, 128, 128, 8
        $region88: #{tpu_custom_call.1} parent=39 // pred_fallthru
          _
      $region40: #{tpu_custom_call.1} parent=5 // pred_fallthru
        _
      %p907 = scmp.le.s32.totalorder 2, %s27
      // Predicated region
      $region89: #{tpu_custom_call.1} parent=5 // pred_check
        %p908 = pneg %p907
      $region90: #{tpu_custom_call.1} parent=5 // pred_check_branch
        %910 = sbr.rel (%p908) target = $region92
      $region91: #{tpu_custom_call.1} parent=5 // pred_region
        %s911 = ssub.s32 %s27, 2
        // Predicated region
        $region93: #{tpu_custom_call.1} parent=91 // pred_check
          %p912 = pneg %p166
        $region94: #{tpu_custom_call.1} parent=91 // pred_check_branch
          %914 = sbr.rel (%p912) target = $region96
        $region95: #{tpu_custom_call.1} parent=91 // pred_region
          %s915 = sand.u32 %s151, 1
          %s916 = scalar_lea.sflag [#allocation9], %s915
          %s917 = sand.u32 %s151, 1
          %s918 = smul.addr %s917, 128
          %s919 = scalar_lea.vmem [#allocation8], %s918
          %920 = dma.done %s916, 2048
        $region96: #{tpu_custom_call.1} parent=91 // pred_fallthru
          _
      $region92: #{tpu_custom_call.1} parent=5 // pred_fallthru
        _
    $region6: #{tpu_custom_call.1} parent=1 // loop_footer
      %s31 = sadd.s32 1, %s27
    $region7: #{tpu_custom_call.1} parent=1 // loop_footer_branch
      %26 = sbr.rel target = $region3
    $region8: #{tpu_custom_call.1} parent=1 // loop_exit
      _
    %921 = vsyncpa [#allocation9], 1
    %s922 = scalar_lea.sflag [#allocation9], 1
    %923 = vsyncpa %s922, 1
  %924 = vsyncmov [#allocation4]
  %s925 = vpop.sfrf %924
  %p926 = scmp.eq.s32.totalorder %s925, 0
  %p927 = pneg %p926
  %929 = shalt.err (%p927)

</llo_original>
